<compile_context>
chip_gen: v7x
topology: tpu7x:2x2x1
jax: 0.10.0
libtpu: 0.0.40
codegen_flags: <defaults>
</compile_context>

<pallas_src>
import functools

import jax
import jax.numpy as jnp
import numpy as np
from jax import lax
from jax.experimental import pallas as pl
from jax.experimental.pallas import tpu as pltpu


def _round_up(x, m):
    return ((x + m - 1) // m) * m


# -----------------------------------------------------------------------------
# Kernel: one (tm, tn) output tile = X_tile @ W_tile in a single MXU pass.
# No reduction grid axis, no scratch accumulator: the whole (padded) N
# contraction is consumed by one jnp.dot with an f32 result written straight
# to the output block.
# -----------------------------------------------------------------------------
def _dft_kernel(x_ref, w_ref, o_ref):
    o_ref[...] = jnp.dot(x_ref[...], w_ref[...], preferred_element_type=jnp.float32)


@functools.lru_cache(maxsize=None)
def _device_twiddles(n: int, dtype_name: str):
    """Device-resident padded [cos | sin] twiddles for bins 0 .. ceil(n/2)-1.

    For real input only ceil(n/2) bins are computed on the MXU; for even n the
    Nyquist bin is deliberately dropped (it is a trivial alternating-sign row
    sum, rebuilt in the glue) so the twiddle width is exactly n and the sin
    half starts on a lane-aligned column.  Cached per (n, dtype) so the O(n^2)
    transcendentals, the cast and the host->device transfer happen once.
    """
    k_kernel = (n + 1) // 2
    nvec = np.arange(n, dtype=np.int64)
    kvec = np.arange(k_kernel, dtype=np.int64)
    nk = np.mod(np.outer(nvec, kvec), n).astype(np.float64)  # exact angles, large N
    theta = (-2.0 * np.pi / n) * nk
    w = np.concatenate([np.cos(theta), np.sin(theta)], axis=1).astype(np.float32)

    ncp = _round_up(n, 128)
    wp = _round_up(2 * k_kernel, 128)
    w_pad = np.zeros((ncp, wp), dtype=np.float32)
    w_pad[:n, : 2 * k_kernel] = w
    return jnp.asarray(w_pad).astype(jnp.dtype(dtype_name))


def _pick_tm(h: int) -> int:
    """Row tile: 16-aligned (bf16 sublane packing), minimal padding, and >=2
    tiles for mid-size h so both v7x TensorCores get work."""
    h = max(h, 1)
    if h <= 128:
        return _round_up(h, 16)          # single small row tile
    if h <= 256:
        return 128                       # 2 row tiles -> both v7x TCs busy
    cands = [128, 256] + ([512] if h >= 1024 else [])
    best_tm, best_pad = None, None
    for cand in cands:
        pad = _round_up(h, cand) - h
        if best_pad is None or pad < best_pad or (pad == best_pad and cand > best_tm):
            best_tm, best_pad = cand, pad
    return best_tm


_VMEM_PLAN_BUDGET = 48 * 1024 * 1024     # stay safely under v7x's 64 MiB per-TC VMEM


def _pick_tn(wp: int, ncp: int, tm: int, itemsize: int) -> int:
    """Widest 128-aligned output tile whose (double-buffered) footprint fits."""
    tn = wp
    while tn > 128:
        need = 2 * (tm * ncp * itemsize + ncp * tn * itemsize + tm * tn * 4)
        if need <= _VMEM_PLAN_BUDGET:
            break
        tn = _round_up(-(-tn // 2), 128)
    return tn


@functools.partial(
    jax.jit,
    static_argnames=(
        "h", "n", "k_kernel", "tm", "tn", "hp", "ncp", "wp_pad", "compute_dtype",
    ),
)
def _fourier_half_run(x_kept, w, *, h, n, k_kernel, tm, tn, hp, ncp, wp_pad,
                      compute_dtype):
    itemsize = jnp.dtype(compute_dtype).itemsize

    xk = x_kept.astype(compute_dtype)
    x_pad = jnp.pad(xk, ((0, hp - h), (0, ncp - n)))
    if wp_pad > w.shape[1]:
        w = jnp.pad(w, ((0, 0), (0, wp_pad - w.shape[1])))

    grid = (hp // tm, wp_pad // tn)
    vmem_need = 2 * (tm * ncp * itemsize + ncp * tn * itemsize + tm * tn * 4)
    vmem_limit = int(min(64 * 1024 * 1024, max(vmem_need + (2 << 20), 16 << 20)))

    out = pl.pallas_call(
        _dft_kernel,
        out_shape=jax.ShapeDtypeStruct((hp, wp_pad), jnp.float32),
        grid_spec=pltpu.PrefetchScalarGridSpec(
            num_scalar_prefetch=0,
            grid=grid,
            in_specs=[
                pl.BlockSpec((tm, ncp), lambda i, j: (i, 0)),   # X: one pass
                pl.BlockSpec((ncp, tn), lambda i, j: (0, j)),   # W: VMEM-resident
            ],
            out_specs=pl.BlockSpec((tm, tn), lambda i, j: (i, j)),
        ),
        compiler_params=pltpu.CompilerParams(
            dimension_semantics=("parallel", "parallel"),
            vmem_limit_bytes=vmem_limit,
        ),
    )(x_pad, w)

    re_k = out[:h, :k_kernel]
    im_k = out[:h, k_kernel: 2 * k_kernel]

    # Conjugate-symmetry mirror for bins ceil(n/2)+? .. n-1:  Y[n-k] = conj(Y[k]).
    # Entire epilogue stays inside this jit so XLA fuses gather/concat/pack.
    re_mirror = re_k[:, 1:][:, ::-1]
    im_mirror = -im_k[:, 1:][:, ::-1]
    if n % 2 == 0:
        # Nyquist bin (dropped from the matmul so W stays lane-aligned at width n):
        # Y[n/2] = sum_j x[j] * (-1)^j  (purely real).
        signs = 1.0 - 2.0 * (jnp.arange(n, dtype=jnp.float32) % 2.0)
        nyq = jnp.sum(x_kept.astype(jnp.float32) * signs[None, :], axis=1,
                      keepdims=True)
        re = jnp.concatenate([re_k, nyq, re_mirror], axis=1)
        im = jnp.concatenate([im_k, jnp.zeros_like(nyq), im_mirror], axis=1)
    else:
        re = jnp.concatenate([re_k, re_mirror], axis=1)
        im = jnp.concatenate([im_k, im_mirror], axis=1)
    return lax.complex(re, im)


def fourier_half(x, *, compute_dtype=None):
    """Equivalent of torch.fft.fft(X)[0 : X.shape[1] // 2] for 2-D real X."""
    # TODO(synk): complex-valued X would need a full (non-Hermitian) DFT path;
    # this kernel assumes real input and exploits conjugate symmetry.
    # TODO(synk): for N >~ 4096 a two-stage Cooley-Tukey split (two smaller
    # twiddle matmuls) would cut FLOPs and keep twiddles VMEM-resident on v7x.
    rows, cols = x.shape
    half = cols // 2
    x_kept = x[:half, :]             # DFT is row-wise -> slice kept rows first
    h, n = x_kept.shape

    if compute_dtype is None:
        # bf16 (native MXU dtype) for short transforms; f32 above N=1024 where
        # bf16 twiddle phase error would start to show in long dot products.
        compute_dtype = jnp.bfloat16 if n <= 1024 else jnp.float32
    itemsize = jnp.dtype(compute_dtype).itemsize

    k_kernel = (n + 1) // 2
    w = _device_twiddles(n, jnp.dtype(compute_dtype).name)
    ncp, wp0 = w.shape

    tm = _pick_tm(h)
    hp = _round_up(max(h, 1), tm)
    tn = _pick_tn(wp0, ncp, tm, itemsize)
    # v7x megacore: if there is only a single row tile, split the frequency axis
    # so both TensorCores get work (harmless on the single-TC v5e/v6e).
    if hp // tm == 1 and tn == wp0 and wp0 % 256 == 0:
        tn = wp0 // 2
    wp_pad = _round_up(wp0, tn)

    return _fourier_half_run(
        x_kept, w,
        h=h, n=n, k_kernel=k_kernel,
        tm=tm, tn=tn, hp=hp, ncp=ncp, wp_pad=wp_pad,
        compute_dtype=compute_dtype,
    )


if __name__ == "__main__":
    key = jax.random.PRNGKey(0)

    def rel_err(a, b):
        a = np.asarray(a)
        b = np.asarray(b)
        return float(np.max(np.abs(a - b)) / np.max(np.abs(b)))

    # Primary small case: 2-D real input, as in the module's intended use.
    X = jax.random.normal(key, (16, 16), dtype=jnp.float32)
    ref = jnp.fft.fft(X)[: X.shape[1] // 2]

    # f32 twiddles / input: tight check against jnp.fft.
    out_f32 = jax.block_until_ready(fourier_half(X, compute_dtype=jnp.float32))
    assert out_f32.shape == ref.shape and out_f32.dtype == jnp.complex64
    np.testing.assert_allclose(
        np.asarray(out_f32), np.asarray(ref), rtol=1e-3, atol=1e-3
    )

    # Fast bf16 path (bf16 inputs/twiddles, f32 accumulation): bf16 tolerance.
    out_bf16 = jax.block_until_ready(fourier_half(X, compute_dtype=jnp.bfloat16))
    assert rel_err(out_bf16, ref) < 5e-2, "bf16 path error too large"

    # Extra coverage: odd N (no Nyquist bin) and rows < cols // 2 clamping.
    for shape in [(20, 15), (48, 160)]:
        key, sub = jax.random.split(key)
        Xi = jax.random.normal(sub, shape, dtype=jnp.float32)
        refi = jnp.fft.fft(Xi)[: Xi.shape[1] // 2]
        outi = jax.block_until_ready(fourier_half(Xi, compute_dtype=jnp.float32))
        assert outi.shape == refi.shape
        assert rel_err(outi, refi) < 5e-3, f"f32 path error too large for {shape}"

    print("KERNEL_OK")
</pallas_src>

<mosaic_0001>
module attributes {stable_mosaic.version = 11 : i64} {
  func.func @_dft_kernel(%arg0: i32, %arg1: i32, %arg2: memref<16x128xf32, #tpu.memory_space<vmem>>, %arg3: memref<128x128xf32, #tpu.memory_space<vmem>>, %arg4: memref<16x128xf32, #tpu.memory_space<vmem>>) attributes {dimension_semantics = [#tpu.dimension_semantics<parallel>, #tpu.dimension_semantics<parallel>], iteration_bounds = array<i64: 1, 1>, scalar_prefetch = 0 : i64, scratch_operands = 0 : i64, tpu.core_type = #tpu.core_type<tc>, window_params = [{transform_indices = @transform_0, window_bounds = array<i64: 16, 128>}, {transform_indices = @transform_1, window_bounds = array<i64: 128, 128>}, {transform_indices = @transform_2, window_bounds = array<i64: 16, 128>}]} {
    %c0 = arith.constant 0 : index
    %c0_0 = arith.constant 0 : index
    %0 = vector.load %arg2[%c0, %c0_0] : memref<16x128xf32, #tpu.memory_space<vmem>>, vector<16x128xf32>
    %c0_1 = arith.constant 0 : index
    %c0_2 = arith.constant 0 : index
    %1 = vector.load %arg3[%c0_1, %c0_2] : memref<128x128xf32, #tpu.memory_space<vmem>>, vector<128x128xf32>
    %cst = arith.constant dense<0.000000e+00> : vector<16x128xf32>
    %2 = tpu.matmul %0, %1, %cst {dimension_numbers = #tpu.dot_dimension_numbers<[1], [0], [0], [1], [0, 0, 1, 1], [], []>} : vector<16x128xf32>, vector<128x128xf32>, vector<16x128xf32> -> vector<16x128xf32>
    %c0_3 = arith.constant 0 : index
    %c0_4 = arith.constant 0 : index
    %3 = vector.load %arg4[%c0_3, %c0_4] : memref<16x128xf32, #tpu.memory_space<vmem>>, vector<16x128xf32>
    tpu.vector_store %arg4[%c0_3, %c0_4], %2 {strides = array<i32>} : memref<16x128xf32, #tpu.memory_space<vmem>>, vector<16x128xf32>,
    return
  }
  func.func @transform_0(%arg0: i32, %arg1: i32) -> (i32, i32) {
    %c0_i32 = arith.constant 0 : i32
    %c0_i32_0 = arith.constant 0 : i32
    return %arg0, %c0_i32 : i32, i32
  }
  func.func @transform_1(%arg0: i32, %arg1: i32) -> (i32, i32) {
    %c0_i32 = arith.constant 0 : i32
    %c0_i32_0 = arith.constant 0 : i32
    return %c0_i32, %arg1 : i32, i32
  }
  func.func @transform_2(%arg0: i32, %arg1: i32) -> (i32, i32) {
    %c0_i32 = arith.constant 0 : i32
    return %arg0, %arg1 : i32, i32
  }
}

</mosaic_0001>

<llo_original>
// kernel: neg.1
$region0: #{neg.1}
  #allocation0 [shape = 's32[1]{0}', space=sflag, size = 0x4, scoped, tag = 'scoped memory for neg.1']
  %s0 = inlined_call_operand.vmem [shape: f32[8,7], index: 0, kind: input, shape index: {}]
  %s1 = inlined_call_operand.vmem [shape: f32[8,7], index: 1, kind: output, shape index: {}]
  %v2 = vld [vmem:[%s0] sm:$0xff]
  %3 = xla_tuple %v2
  %4 = xla_tuple %3
  %v5 = vxor.u32 %v2, 2147483648
  %6 = xla_tuple %v5
  %7 = vst [vmem:[%s1] sm:$0xff] %v5

// kernel: custom-call
$region0: #{custom-call}
  %s0 = inlined_call_operand.vmem [shape: f32[8,16], index: 0, kind: input, shape index: {}]
  %s1 = inlined_call_operand.vmem [shape: f32[8,16], index: 1, kind: input, shape index: {}]
  %s2 = inlined_call_operand.hbm [shape: c64[8,16], index: 2, kind: output, shape index: {}]
  %s3 = scalar_lea.hbm %s2, 128
  $region1: #{custom-call} parent=0
    #allocation0 [shape = 's32[1]{0}', space=sflag, size = 0x4, scoped, tag = 'scoped memory for custom-call']
    %4 = vsyncpa [#allocation0], 0
    %s5 = sshll.u32 %s0, 4
    %s6 = int_to_ptr.vmem [resolvable:$true] %s5
    %8 = dma.vmem_to_hbm [thread:$0]  %s6, 128, %s2, [#allocation0]
    %9 = dma.done [#allocation0], 128
    %10 = vsyncpa [#allocation0], 1
  $region2: #{custom-call} parent=0
    #allocation1 [shape = 's32[1]{0}', space=sflag, size = 0x4, scoped, tag = 'scoped memory for custom-call']
    %11 = vsyncpa [#allocation1], 0
    %s12 = sshll.u32 %s1, 4
    %s13 = int_to_ptr.vmem [resolvable:$true] %s12
    %15 = dma.vmem_to_hbm [thread:$0]  %s13, 128, %s3, [#allocation1]
    %16 = dma.done [#allocation1], 128
    %17 = vsyncpa [#allocation1], 1

// kernel: _fourier_half_run.1
$region0: #{_fourier_half_run.1}
  #allocation0 [shape = 'u32[]', space=smem, size = 0x4, offset = 0x4, fixed_abs, tag = 'smem constant byte address 0x4 - core index']
  #allocation1 [shape = 'u32[144,128]{1,0:T(1,128)}', space=vmem, size = 0x12000, scoped, tag = 'internal scratch']
  %s0 = inlined_call_operand.vmem [shape: f32[16,128], index: 0, kind: input, shape index: {}]
  %s1 = inlined_call_operand.hbm [shape: f32[128,128], index: 1, kind: input, shape index: {}]
  %s2 = inlined_call_operand.vmem [shape: f32[16,128], index: 2, kind: output, shape index: {}]
  %s3 = sld [smem:[#allocation0]]
  $region22: #{_fourier_half_run.1} parent=0
    _
  %s5 = ssub.s32 1, %s3
  %s6 = scalar_select 0, %s5, %s3
  $region1: #{_fourier_half_run.1} parent=0
    #allocation2 [shape = 'u8[65536]{0}', space=vmem, size = 0x10000, scoped, tag = 'input window, operand 1, single buffered']
    #allocation3 [shape = 's32[1]{0}', space=sflag, size = 0x4, scoped, tag = 'scoped memory for _fourier_half_run.1']
    %7 = vsyncpa [#allocation3], 0
    // Predicated region
    $region2: #{_fourier_half_run.1} parent=1 // pred_check
      _
    $region3: #{_fourier_half_run.1} parent=1 // pred_check_branch
      %9 = sbr.rel (0) target = $region5
    $region4: #{_fourier_half_run.1} parent=1 // pred_region
      _
    $region5: #{_fourier_half_run.1} parent=1 // pred_fallthru
      _
    // Predicated region
    $region6: #{_fourier_half_run.1} parent=1 // pred_check
      _
    $region7: #{_fourier_half_run.1} parent=1 // pred_check_branch
      %11 = sbr.rel (0) target = $region9
    $region8: #{_fourier_half_run.1} parent=1 // pred_region
      %s13 = ssub.s32 2048, 2048
      %14 = vsyncadd [#allocation3], %s13
      %s15 = sshll.u32 [#allocation2], 4
      %s16 = int_to_ptr.vmem [resolvable:$true] %s15
      %21 = dma.hbm_to_vmem [thread:$0]  %s1, 2048, %s16, [#allocation3], 128, 128, 8
    $region9: #{_fourier_half_run.1} parent=1 // pred_fallthru
      _
    // Predicated region
    $region10: #{_fourier_half_run.1} parent=1 // pred_check
      _
    $region11: #{_fourier_half_run.1} parent=1 // pred_check_branch
      %23 = sbr.rel (0) target = $region13
    $region12: #{_fourier_half_run.1} parent=1 // pred_region
      %24 = dma.done [#allocation3], 2048
    $region13: #{_fourier_half_run.1} parent=1 // pred_fallthru
      _
    %v25 = vld [vmem:[%s0] sm:$0xff]
    %v26 = vld [vmem:[%s0 + $0x8] sm:$0xff]
    %v27 = vld [vmem:[#allocation2] sm:$0xff]
    %v28 = vld [vmem:[#allocation2 + $0x8] sm:$0xff]
    %v29 = vld [vmem:[#allocation2 + $0x10] sm:$0xff]
    %v30 = vld [vmem:[#allocation2 + $0x18] sm:$0xff]
    %v31 = vld [vmem:[#allocation2 + $0x20] sm:$0xff]
    %v32 = vld [vmem:[#allocation2 + $0x28] sm:$0xff]
    %v33 = vld [vmem:[#allocation2 + $0x30] sm:$0xff]
    %v34 = vld [vmem:[#allocation2 + $0x38] sm:$0xff]
    %v35 = vld [vmem:[#allocation2 + $0x40] sm:$0xff]
    %v36 = vld [vmem:[#allocation2 + $0x48] sm:$0xff]
    %v37 = vld [vmem:[#allocation2 + $0x50] sm:$0xff]
    %v38 = vld [vmem:[#allocation2 + $0x58] sm:$0xff]
    %v39 = vld [vmem:[#allocation2 + $0x60] sm:$0xff]
    %v40 = vld [vmem:[#allocation2 + $0x68] sm:$0xff]
    %v41 = vld [vmem:[#allocation2 + $0x70] sm:$0xff]
    %v42 = vld [vmem:[#allocation2 + $0x78] sm:$0xff]
    %43 = vmatprep.subr.mxu0 0.0
    %44 = vmatpush1.msra.mxu0 %v27
    %45 = vmatprep.subr.mxu0 0.0
    %46 = vmatpush1.msra.mxu0 %v28
    %47 = vmatprep.subr.mxu0 0.0
    %48 = vmatpush1.msra.mxu0 %v29
    %49 = vmatprep.subr.mxu0 0.0
    %50 = vmatpush1.msra.mxu0 %v30
    %51 = vmatprep.subr.mxu0 0.0
    %52 = vmatpush1.msra.mxu0 %v31
    %53 = vmatprep.subr.mxu0 0.0
    %54 = vmatpush1.msra.mxu0 %v32
    %55 = vmatprep.subr.mxu0 0.0
    %56 = vmatpush1.msra.mxu0 %v33
    %57 = vmatprep.subr.mxu0 0.0
    %58 = vmatpush1.msra.mxu0 %v34
    %59 = vmatprep.subr.mxu0 0.0
    %60 = vmatpush1.msra.mxu0 %v35
    %61 = vmatprep.subr.mxu0 0.0
    %62 = vmatpush1.msra.mxu0 %v36
    %63 = vmatprep.subr.mxu0 0.0
    %64 = vmatpush1.msra.mxu0 %v37
    %65 = vmatprep.subr.mxu0 0.0
    %66 = vmatpush1.msra.mxu0 %v38
    %67 = vmatprep.subr.mxu0 0.0
    %68 = vmatpush1.msra.mxu0 %v39
    %69 = vmatprep.subr.mxu0 0.0
    %70 = vmatpush1.msra.mxu0 %v40
    %71 = vmatprep.subr.mxu0 0.0
    %72 = vmatpush1.msra.mxu0 %v41
    %73 = vmatprep.subr.mxu0 0.0
    %74 = vmatpush1.msra.mxu0 %v42
    %75 = vmatprep.subr.mxu0 0.0
    %76 = vmatpush1.msra.mxu0 0.0
    %77 = vmatprep.subr.mxu0 0.0
    %78 = vmatpush1.msra.mxu0 0.0
    %79 = vmatprep.subr.mxu0 0.0
    %80 = vmatpush1.msra.mxu0 0.0
    %81 = vmatprep.subr.mxu0 0.0
    %82 = vmatpush1.msra.mxu0 0.0
    %83 = vmatprep.subr.mxu0 0.0
    %84 = vmatpush1.msra.mxu0 0.0
    %85 = vmatprep.subr.mxu0 0.0
    %86 = vmatpush1.msra.mxu0 0.0
    %87 = vmatprep.subr.mxu0 0.0
    %88 = vmatpush1.msra.mxu0 0.0
    %89 = vmatprep.subr.mxu0 0.0
    %90 = vmatpush1.msra.mxu0 0.0
    %91 = vmatprep.subr.mxu0 0.0
    %92 = vmatpush1.msra.mxu0 0.0
    %93 = vmatprep.subr.mxu0 0.0
    %94 = vmatpush1.msra.mxu0 0.0
    %95 = vmatprep.subr.mxu0 0.0
    %96 = vmatpush1.msra.mxu0 0.0
    %97 = vmatprep.subr.mxu0 0.0
    %98 = vmatpush1.msra.mxu0 0.0
    %99 = vmatprep.subr.mxu0 0.0
    %100 = vmatpush1.msra.mxu0 0.0
    %101 = vmatprep.subr.mxu0 0.0
    %102 = vmatpush1.msra.mxu0 0.0
    %103 = vmatprep.subr.mxu0 0.0
    %104 = vmatpush1.msra.mxu0 0.0
    %105 = vmatprep.subr.mxu0 0.0
    %106 = vmatpush1.msra.mxu0 0.0
    %107 = vmatprep.mubr.f32.mxu0 0.0
    %108 = vmatmul.mubr.f32.gmra.mrb[0].mxu0 %v25
    %v109 = vpop.f32.mrb[0].mxu0
    %v110 = vadd.f32 0.0, %v109
    %v111 = vpop.f32.mrb[0].mxu0
    %112 = vmatprep.mubr.f32.mxu0 0.0
    %113 = vmatmul.mubr.f32.gmra.mrb[0].mxu0 %v26
    %v114 = vpop.f32.mrb[0].mxu0
    %v115 = vadd.f32 0.0, %v114
    %v116 = vpop.f32.mrb[0].mxu0
    %117 = vdwg.mxu0
    %118 = vst [vmem:[%s2] sm:$0xff] %v110
    %119 = vst [vmem:[%s2 + $0x8] sm:$0xff] %v115
    // Predicated region
    $region14: #{_fourier_half_run.1} parent=1 // pred_check
      _
    $region15: #{_fourier_half_run.1} parent=1 // pred_check_branch
      %121 = sbr.rel (0) target = $region17
    $region16: #{_fourier_half_run.1} parent=1 // pred_region
      _
    $region17: #{_fourier_half_run.1} parent=1 // pred_fallthru
      _
    // Predicated region
    $region18: #{_fourier_half_run.1} parent=1 // pred_check
      _
    $region19: #{_fourier_half_run.1} parent=1 // pred_check_branch
      %123 = sbr.rel (0) target = $region21
    $region20: #{_fourier_half_run.1} parent=1 // pred_region
      _
    $region21: #{_fourier_half_run.1} parent=1 // pred_fallthru
      _
    %124 = vsyncpa [#allocation3], 1

</llo_original>
